<compile_context>
chip_gen: v6e
topology: v6e:2x2x1
jax: 0.10.0
libtpu: 0.0.40
codegen_flags: <defaults>
</compile_context>

<pallas_src>
import math

import jax
import jax.numpy as jnp
import numpy as np
from jax import lax
from jax.experimental import pallas as pl
from jax.experimental.pallas import tpu as pltpu

CONF_BASE = 0.1
CONF_SCALE = 0.25
CONF_EXP = 0.5  # == 0.5 -> sqrt in-kernel
_HALF_BASE = 0.5 * CONF_BASE
_HALF_SCALE = 0.5 * CONF_SCALE


def _round_up(x, m):
    return ((x + m - 1) // m) * m


def swivel_loss_kernel(wia_ref, wja_ref, co_ref, out_ref):
    co = co_ref[...].astype(jnp.float32)           # (TR, TC); -1 marks padding

    # err0 = predictions + b_i + b_j - matrix_log_sum.
    # Biases were folded into two augmented contraction columns in the wrapper,
    # so a single NT matmul (contract last dims, f32 accumulate) yields err0.
    err0 = lax.dot_general(
        wia_ref[...], wja_ref[...],
        dimension_numbers=(((1,), (1,)), ((), ())),
        preferred_element_type=jnp.float32)        # (TR, TC) f32

    nonzero = co > 0.0            # valid & nonzero counts
    is_zero = co == 0.0           # valid & zero counts (padding -1 -> neither)
    co_safe = jnp.maximum(co, 0.0)  # keep dead branches finite (no NaN from -1)

    # 3 transcendentals / element: exp, merged log, sqrt.
    exp_t = jnp.exp(-jnp.abs(err0))                                   # EUP #1
    log_arg = jnp.where(nonzero, co_safe, 1.0 + exp_t)
    merged_log = jnp.log(log_arg)                                     # EUP #2
    #   co > 0 : merged_log = log(co)           -> err_l2 = err0 - log(co)
    #   co == 0: merged_log = log1p(exp(-|e0|)) -> softplus = max(e0,0)+merged_log

    err_l2 = err0 - merged_log
    l2_term = (_HALF_BASE + _HALF_SCALE * jnp.sqrt(co_safe)) * (err_l2 * err_l2)  # EUP #3
    sp_term = jnp.maximum(err0, 0.0) + merged_log

    per_elem = jnp.where(nonzero, l2_term, jnp.where(is_zero, sp_term, 0.0))
    partial = jnp.sum(per_elem)

    # Cheapest writeback: splat the partial into this tile's private lane-dense
    # (8,128) block; the host reads one element per block (exact reduction).
    out_ref[...] = jnp.full(out_ref.shape, partial, jnp.float32)


def swivel_loss(wi_emb, wj_emb, bi_emb, bj_emb,
                row_indices, col_indices, co_occurrences, matrix_log_sum,
                *, tile_r=256, tile_c=512, matmul_input_dtype=jnp.bfloat16):
    """Swivel shard loss.

    matmul_input_dtype=bfloat16 (default) uses the MXU's native bf16 path with
    f32 accumulation and halves weight HBM/VMEM traffic; pass jnp.float32 for
    bit-faithful reference numerics (biases/matrix_log_sum are folded into the
    matmul operands and therefore share its dtype)."""
    R = int(row_indices.shape[0])
    C = int(col_indices.shape[0])
    D = int(wi_emb.shape[1])
    dtype = jnp.dtype(matmul_input_dtype)

    # --- glue: embedding gathers (XLA gather) + bias folding ------------------
    # TODO(synk): fuse these gathers into the kernel (PrefetchScalarGridSpec
    # with row/col index refs + manual per-row DMA gather) to avoid
    # materializing and re-reading the gathered copies in HBM.
    w_i = wi_emb[row_indices].astype(dtype)                          # (R, D)
    w_j = wj_emb[col_indices].astype(dtype)                          # (C, D) (no transpose)
    b_i = bi_emb[row_indices].astype(dtype)                          # (R, 1)
    b_jm = (bj_emb[col_indices].astype(jnp.float32)
            - jnp.float32(matrix_log_sum)).astype(dtype)             # (C, 1)
    co = co_occurrences.astype(jnp.float32)                          # (R, C)

    # Augment the contraction dim with two bias columns:
    #   LHS: [w_i | b_i | 1],  RHS: [w_j | 1 | b_j - mls]
    #   => (LHS @ RHS^T)[r,c] = pred[r,c] + b_i[r] + b_j[c] - mls = err0[r,c]
    ones_r = jnp.ones((R, 1), dtype)
    ones_c = jnp.ones((C, 1), dtype)
    wi_aug = jnp.concatenate([w_i, b_i, ones_r], axis=1)             # (R, D+2)
    wj_aug = jnp.concatenate([w_j, ones_c, b_jm], axis=1)            # (C, D+2)

    # --- pad to TPU-friendly tiles ---------------------------------------------
    tr = min(_round_up(tile_r, 8), _round_up(R, 8))      # sublane-aligned row tile
    tc = min(_round_up(tile_c, 128), _round_up(C, 128))  # lane-aligned column tile
    d_pad = _round_up(D + 2, 128)                        # MXU contraction alignment
    r_pad = _round_up(R, tr)
    c_pad = _round_up(C, tc)

    wi_aug = jnp.pad(wi_aug, ((0, r_pad - R), (0, d_pad - (D + 2))))
    wj_aug = jnp.pad(wj_aug, ((0, c_pad - C), (0, d_pad - (D + 2))))
    # sentinel -1 marks padded co entries; the kernel maps them to zero loss
    co = jnp.pad(co, ((0, r_pad - R), (0, c_pad - C)), constant_values=-1.0)

    grid_r = r_pad // tr
    grid_c = c_pad // tc

    # Grid ordering: the operand that varies with the *inner* axis is fully
    # re-streamed once per outer block.  Pick the ordering with less redundant
    # weight traffic.
    if grid_c * r_pad <= grid_r * c_pad:
        grid = (grid_c, grid_r)                 # columns outer, rows inner
        i_of = lambda a, b: b
        j_of = lambda a, b: a
    else:
        grid = (grid_r, grid_c)                 # rows outer, columns inner
        i_of = lambda a, b: a
        j_of = lambda a, b: b

    # VMEM budget: double-buffered tiles + elementwise temporaries, clamped to
    # the device's physical VMEM (v7x: 64 MiB per TC; v5e/v6e: 128 MiB).
    itemsize = dtype.itemsize
    est = (2 * (tr + tc) * d_pad * itemsize     # double-buffered weight tiles
           + 2 * tr * tc * 4                    # double-buffered co tile
           + 4 * tr * tc * 4                    # f32 elementwise temporaries
           + 2 * 8 * 128 * 4)                   # output blocks
    try:
        vmem_cap = int(pltpu.get_tpu_info().vmem_capacity_bytes)
    except Exception:
        vmem_cap = 64 * 1024 * 1024
    vmem_limit = int(min(vmem_cap - 2 * 1024 * 1024,
                         max(2 * est, 16 * 1024 * 1024)))

    out = pl.pallas_call(
        swivel_loss_kernel,
        out_shape=jax.ShapeDtypeStruct((grid_r * 8, grid_c * 128), jnp.float32),
        grid_spec=pltpu.PrefetchScalarGridSpec(
            num_scalar_prefetch=0,
            grid=grid,
            in_specs=[
                pl.BlockSpec((tr, d_pad), lambda a, b: (i_of(a, b), 0)),   # [w_i|b_i|1]
                pl.BlockSpec((tc, d_pad), lambda a, b: (j_of(a, b), 0)),   # [w_j|1|b_j-mls]
                pl.BlockSpec((tr, tc), lambda a, b: (i_of(a, b), j_of(a, b))),  # co
            ],
            out_specs=pl.BlockSpec((8, 128),
                                   lambda a, b: (i_of(a, b), j_of(a, b))),
        ),
        compiler_params=pltpu.CompilerParams(
            dimension_semantics=("parallel", "parallel"),
            vmem_limit_bytes=vmem_limit),
    )(wi_aug, wj_aug, co)

    # One meaningful element per (8,128) block -> exact per-tile partial sums.
    partials = out.reshape(grid_r, 8, grid_c, 128)[:, 0, :, 0]
    loss_multiplier = 1.0 / math.sqrt(R * C)
    return jnp.float32(loss_multiplier) * jnp.sum(partials)


def swivel_loss_ref(wi_emb, wj_emb, bi_emb, bj_emb,
                    row_indices, col_indices, co_occurrences, matrix_log_sum):
    """Pure-JAX reference mirroring the PyTorch forward."""
    w_i = wi_emb[row_indices]
    w_j = wj_emb[col_indices]
    b_i = bi_emb[row_indices]
    b_j = bj_emb[col_indices]
    predictions = w_i @ w_j.T
    co = co_occurrences.astype(jnp.float32)
    nonzero = (co != 0).astype(jnp.float32)
    zero = 1.0 - nonzero
    objectives = jnp.log(co + 1e-30) * nonzero
    objectives = objectives - b_i
    objectives = objectives - jnp.squeeze(b_j)
    objectives = objectives + matrix_log_sum
    err = predictions - objectives
    l2_conf = CONF_BASE + CONF_SCALE * jnp.power(co, CONF_EXP)
    mult = 1.0 / math.sqrt(row_indices.shape[0] * col_indices.shape[0])
    l2_loss = mult * jnp.sum(0.5 * l2_conf * err * err * nonzero)
    sig_loss = mult * jnp.sum(jax.nn.softplus(err) * zero)
    return l2_loss + sig_loss


def _make_case(key, num_embeddings, embedding_dim, R, C):
    k_wi, k_wj, k_bi, k_bj, k_ri, k_ci, k_co = jax.random.split(key, 7)
    std_w = math.sqrt(2.0 / (num_embeddings + embedding_dim))
    std_b = math.sqrt(2.0 / (num_embeddings + 1))
    wi_emb = (jax.random.normal(k_wi, (num_embeddings, embedding_dim)) * std_w).astype(jnp.float32)
    wj_emb = (jax.random.normal(k_wj, (num_embeddings, embedding_dim)) * std_w).astype(jnp.float32)
    bi_emb = (jax.random.normal(k_bi, (num_embeddings, 1)) * std_b).astype(jnp.float32)
    bj_emb = (jax.random.normal(k_bj, (num_embeddings, 1)) * std_b).astype(jnp.float32)
    row_indices = jax.random.randint(k_ri, (R,), 0, num_embeddings)
    col_indices = jax.random.randint(k_ci, (C,), 0, num_embeddings)
    co = jax.random.randint(k_co, (R, C), 0, 5).astype(jnp.float32)
    mls = float(math.log(float(jnp.sum(co)) + 1.0))
    return wi_emb, wj_emb, bi_emb, bj_emb, row_indices, col_indices, co, mls


if __name__ == "__main__":
    key = jax.random.PRNGKey(0)
    k0, k1, k2 = jax.random.split(key, 3)

    # Case 1: small single-tile shard, f32 matmul path (bit-faithful numerics).
    args0 = _make_case(k0, num_embeddings=64, embedding_dim=32, R=8, C=16)
    loss0 = jax.block_until_ready(
        swivel_loss(*args0, matmul_input_dtype=jnp.float32))
    ref0 = jax.block_until_ready(swivel_loss_ref(*args0))
    np.testing.assert_allclose(np.asarray(loss0), np.asarray(ref0), rtol=1e-5, atol=1e-5)

    # Case 2: ragged multi-tile shard exercising padding/masking + grid ordering.
    args1 = _make_case(k1, num_embeddings=128, embedding_dim=72, R=40, C=300)
    loss1 = jax.block_until_ready(
        swivel_loss(*args1, tile_r=16, tile_c=128, matmul_input_dtype=jnp.float32))
    ref1 = jax.block_until_ready(swivel_loss_ref(*args1))
    np.testing.assert_allclose(np.asarray(loss1), np.asarray(ref1), rtol=1e-5, atol=1e-5)

    # Case 3: default bf16 weight/bias streams (MXU-peak path), loose tolerance.
    args2 = _make_case(k2, num_embeddings=200, embedding_dim=64, R=96, C=256)
    loss2 = jax.block_until_ready(swivel_loss(*args2))
    ref2 = jax.block_until_ready(swivel_loss_ref(*args2))
    np.testing.assert_allclose(np.asarray(loss2), np.asarray(ref2), rtol=5e-2, atol=1e-3)

    print("KERNEL_OK")
</pallas_src>

<mosaic_0001>
module attributes {stable_mosaic.version = 11 : i64} {
  func.func @swivel_loss_kernel(%arg0: i32, %arg1: i32, %arg2: memref<8x128xf32, #tpu.memory_space<vmem>>, %arg3: memref<128x128xf32, #tpu.memory_space<vmem>>, %arg4: memref<8x128xf32, #tpu.memory_space<vmem>>, %arg5: memref<8x128xf32, #tpu.memory_space<vmem>>) attributes {dimension_semantics = [#tpu.dimension_semantics<parallel>, #tpu.dimension_semantics<parallel>], iteration_bounds = array<i64: 1, 1>, scalar_prefetch = 0 : i64, scratch_operands = 0 : i64, tpu.core_type = #tpu.core_type<tc>, window_params = [{transform_indices = @transform_0, window_bounds = array<i64: 8, 128>}, {transform_indices = @transform_1, window_bounds = array<i64: 128, 128>}, {transform_indices = @transform_2, window_bounds = array<i64: 8, 128>}, {transform_indices = @transform_3, window_bounds = array<i64: 8, 128>}]} {
    %c0 = arith.constant 0 : index
    %c0_0 = arith.constant 0 : index
    %0 = vector.load %arg4[%c0, %c0_0] : memref<8x128xf32, #tpu.memory_space<vmem>>, vector<8x128xf32>
    %c0_1 = arith.constant 0 : index
    %c0_2 = arith.constant 0 : index
    %1 = vector.load %arg2[%c0_1, %c0_2] : memref<8x128xf32, #tpu.memory_space<vmem>>, vector<8x128xf32>
    %c0_3 = arith.constant 0 : index
    %c0_4 = arith.constant 0 : index
    %2 = vector.load %arg3[%c0_3, %c0_4] : memref<128x128xf32, #tpu.memory_space<vmem>>, vector<128x128xf32>
    %cst = arith.constant dense<0.000000e+00> : vector<8x128xf32>
    %3 = tpu.matmul %1, %2, %cst {dimension_numbers = #tpu.dot_dimension_numbers<[1], [1], [0], [0], [0, 0, 1, 0], [], []>} : vector<8x128xf32>, vector<128x128xf32>, vector<8x128xf32> -> vector<8x128xf32>
    %cst_5 = arith.constant 0.000000e+00 : f32
    %4 = vector.broadcast %cst_5 : f32 to vector<8x128xf32>
    %5 = arith.cmpf ogt, %0, %4 : vector<8x128xf32>
    %cst_6 = arith.constant 0.000000e+00 : f32
    %6 = vector.broadcast %cst_6 : f32 to vector<8x128xf32>
    %7 = arith.cmpf oeq, %0, %6 : vector<8x128xf32>
    %cst_7 = arith.constant 0.000000e+00 : f32
    %8 = vector.broadcast %cst_7 : f32 to vector<8x128xf32>
    %9 = arith.maximumf %0, %8 : vector<8x128xf32>
    %10 = math.absf %3 : vector<8x128xf32>
    %cst_8 = arith.constant 0.000000e+00 : f32
    %11 = vector.broadcast %cst_8 : f32 to vector<8x128xf32>
    %12 = arith.subf %11, %10 : vector<8x128xf32>
    %13 = math.exp %12 : vector<8x128xf32>
    %cst_9 = arith.constant 1.000000e+00 : f32
    %14 = vector.broadcast %cst_9 : f32 to vector<8x128xf32>
    %15 = arith.addf %14, %13 : vector<8x128xf32>
    %16 = arith.select %5, %9, %15 : vector<8x128xi1>, vector<8x128xf32>
    %17 = math.log %16 : vector<8x128xf32>
    %18 = arith.subf %3, %17 : vector<8x128xf32>
    %19 = math.sqrt %9 : vector<8x128xf32>
    %cst_10 = arith.constant 1.250000e-01 : f32
    %20 = vector.broadcast %cst_10 : f32 to vector<8x128xf32>
    %21 = arith.mulf %20, %19 : vector<8x128xf32>
    %cst_11 = arith.constant 5.000000e-02 : f32
    %22 = vector.broadcast %cst_11 : f32 to vector<8x128xf32>
    %23 = arith.addf %22, %21 : vector<8x128xf32>
    %24 = arith.mulf %18, %18 : vector<8x128xf32>
    %25 = arith.mulf %23, %24 : vector<8x128xf32>
    %cst_12 = arith.constant 0.000000e+00 : f32
    %26 = vector.broadcast %cst_12 : f32 to vector<8x128xf32>
    %27 = arith.maximumf %3, %26 : vector<8x128xf32>
    %28 = arith.addf %27, %17 : vector<8x128xf32>
    %cst_13 = arith.constant 0.000000e+00 : f32
    %29 = vector.broadcast %cst_13 : f32 to vector<8x128xf32>
    %30 = arith.select %7, %28, %29 : vector<8x128xi1>, vector<8x128xf32>
    %31 = arith.select %5, %25, %30 : vector<8x128xi1>, vector<8x128xf32>
    %32 = vector.shape_cast %31 : vector<8x128xf32> to vector<1x8x128xf32>
    %cst_14 = arith.constant dense<0.000000e+00> : vector<1xf32>
    %33 = vector.multi_reduction <add>, %32, %cst_14 [1, 2] : vector<1x8x128xf32> to vector<1xf32>
    %34 = vector.shape_cast %33 : vector<1xf32> to vector<1x1x1xf32>
    %35 = vector.extract %34[0, 0, 0] : f32 from vector<1x1x1xf32>
    %36 = vector.broadcast %35 : f32 to vector<8x128xf32>
    %c0_15 = arith.constant 0 : index
    %c0_16 = arith.constant 0 : index
    %37 = vector.load %arg5[%c0_15, %c0_16] : memref<8x128xf32, #tpu.memory_space<vmem>>, vector<8x128xf32>
    tpu.vector_store %arg5[%c0_15, %c0_16], %36 {strides = array<i32>} : memref<8x128xf32, #tpu.memory_space<vmem>>, vector<8x128xf32>,
    return
  }
  func.func @transform_0(%arg0: i32, %arg1: i32) -> (i32, i32) {
    %c0_i32 = arith.constant 0 : i32
    %c0_i32_0 = arith.constant 0 : i32
    return %arg1, %c0_i32 : i32, i32
  }
  func.func @transform_1(%arg0: i32, %arg1: i32) -> (i32, i32) {
    %c0_i32 = arith.constant 0 : i32
    %c0_i32_0 = arith.constant 0 : i32
    return %arg0, %c0_i32 : i32, i32
  }
  func.func @transform_2(%arg0: i32, %arg1: i32) -> (i32, i32) {
    %c0_i32 = arith.constant 0 : i32
    return %arg1, %arg0 : i32, i32
  }
  func.func @transform_3(%arg0: i32, %arg1: i32) -> (i32, i32) {
    %c0_i32 = arith.constant 0 : i32
    return %arg1, %arg0 : i32, i32
  }
}

</mosaic_0001>

<llo_original>
// kernel: tpu_custom_call.1
$region0: #{tpu_custom_call.1}
  #allocation0 [shape = 'u32[]', space=smem, size = 0x4, offset = 0x4, fixed_abs, tag = 'smem constant byte address 0x4 - core index']
  #allocation1 [shape = 'u32[144,128]{1,0:T(1,128)}', space=vmem, size = 0x12000, scoped, tag = 'internal scratch']
  %s0 = inlined_call_operand.hbm [shape: f32[8,128], index: 0, kind: input, shape index: {}]
  %s1 = inlined_call_operand.hbm [shape: f32[128,128], index: 1, kind: input, shape index: {}]
  %s2 = inlined_call_operand.hbm [shape: f32[8,128], index: 2, kind: input, shape index: {}]
  %s3 = inlined_call_operand.hbm [shape: f32[8,128], index: 3, kind: output, shape index: {}]
  %s4 = sld [smem:[#allocation0]]
  $region34: #{tpu_custom_call.1} parent=0
    _
  %s6 = ssub.s32 1, %s4
  %s7 = scalar_select 0, %s6, %s4
  $region1: #{tpu_custom_call.1} parent=0
    #allocation2 [shape = 'u8[4096]{0}', space=vmem, size = 0x1000, scoped, tag = 'input window, operand 0, single buffered']
    #allocation3 [shape = 's32[1]{0}', space=sflag, size = 0x4, scoped, tag = 'scoped memory for tpu_custom_call.1']
    #allocation4 [shape = 's32[1]{0}', space=sflag, size = 0x4, scoped, tag = 'scoped memory for tpu_custom_call.1']
    #allocation5 [shape = 'u8[65536]{0}', space=vmem, size = 0x10000, scoped, tag = 'input window, operand 1, single buffered']
    #allocation6 [shape = 's32[1]{0}', space=sflag, size = 0x4, scoped, tag = 'scoped memory for tpu_custom_call.1']
    #allocation7 [shape = 'u8[4096]{0}', space=vmem, size = 0x1000, scoped, tag = 'input window, operand 2, single buffered']
    #allocation8 [shape = 'u8[4096]{0}', space=vmem, size = 0x1000, scoped, tag = 'output window, operand 0, single buffered']
    %8 = vsyncpa [#allocation3], 0
    %9 = vsyncpa [#allocation6], 0
    %10 = vsyncpa [#allocation4], 0
    // Predicated region
    $region2: #{tpu_custom_call.1} parent=1 // pred_check
      _
    $region3: #{tpu_custom_call.1} parent=1 // pred_check_branch
      %12 = sbr.rel (0) target = $region5
    $region4: #{tpu_custom_call.1} parent=1 // pred_region
      %s14 = ssub.s32 128, 128
      %15 = vsyncadd [#allocation3], %s14
      %s17 = sshll.u32 [#allocation2], 4
      %s18 = int_to_ptr.vmem [resolvable:$true] %s17
      %20 = dma.hbm_to_vmem [thread:$0]  %s0, 128, %s18, [#allocation3]
    $region5: #{tpu_custom_call.1} parent=1 // pred_fallthru
      _
    // Predicated region
    $region6: #{tpu_custom_call.1} parent=1 // pred_check
      _
    $region7: #{tpu_custom_call.1} parent=1 // pred_check_branch
      %22 = sbr.rel (0) target = $region9
    $region8: #{tpu_custom_call.1} parent=1 // pred_region
      %s24 = ssub.s32 2048, 2048
      %25 = vsyncadd [#allocation6], %s24
      %s26 = sshll.u32 [#allocation5], 4
      %s27 = int_to_ptr.vmem [resolvable:$true] %s26
      %32 = dma.hbm_to_vmem [thread:$0]  %s1, 2048, %s27, [#allocation6], 128, 128, 8
    $region9: #{tpu_custom_call.1} parent=1 // pred_fallthru
      _
    // Predicated region
    $region10: #{tpu_custom_call.1} parent=1 // pred_check
      _
    $region11: #{tpu_custom_call.1} parent=1 // pred_check_branch
      %34 = sbr.rel (0) target = $region13
    $region12: #{tpu_custom_call.1} parent=1 // pred_region
      %s36 = ssub.s32 128, 128
      %37 = vsyncadd [#allocation6], %s36
      %s39 = sshll.u32 [#allocation7], 4
      %s40 = int_to_ptr.vmem [resolvable:$true] %s39
      %42 = dma.hbm_to_vmem [thread:$0]  %s2, 128, %s40, [#allocation6]
    $region13: #{tpu_custom_call.1} parent=1 // pred_fallthru
      _
    // Predicated region
    $region14: #{tpu_custom_call.1} parent=1 // pred_check
      _
    $region15: #{tpu_custom_call.1} parent=1 // pred_check_branch
      %44 = sbr.rel (0) target = $region17
    $region16: #{tpu_custom_call.1} parent=1 // pred_region
      %45 = dma.done [#allocation3], 128
    $region17: #{tpu_custom_call.1} parent=1 // pred_fallthru
      _
    // Predicated region
    $region18: #{tpu_custom_call.1} parent=1 // pred_check
      _
    $region19: #{tpu_custom_call.1} parent=1 // pred_check_branch
      %47 = sbr.rel (0) target = $region21
    $region20: #{tpu_custom_call.1} parent=1 // pred_region
      %48 = dma.done [#allocation6], 2048
    $region21: #{tpu_custom_call.1} parent=1 // pred_fallthru
      _
    // Predicated region
    $region22: #{tpu_custom_call.1} parent=1 // pred_check
      _
    $region23: #{tpu_custom_call.1} parent=1 // pred_check_branch
      %50 = sbr.rel (0) target = $region25
    $region24: #{tpu_custom_call.1} parent=1 // pred_region
      %51 = dma.done [#allocation6], 128
    $region25: #{tpu_custom_call.1} parent=1 // pred_fallthru
      _
    %v52 = vld [vmem:[#allocation7] sm:$0xff]
    %v53 = vld [vmem:[#allocation2] sm:$0xff]
    %v54 = vld [vmem:[#allocation5] sm:$0xff]
    %v55 = vld [vmem:[#allocation5 + $0x8] sm:$0xff]
    %v56 = vld [vmem:[#allocation5 + $0x10] sm:$0xff]
    %v57 = vld [vmem:[#allocation5 + $0x18] sm:$0xff]
    %v58 = vld [vmem:[#allocation5 + $0x20] sm:$0xff]
    %v59 = vld [vmem:[#allocation5 + $0x28] sm:$0xff]
    %v60 = vld [vmem:[#allocation5 + $0x30] sm:$0xff]
    %v61 = vld [vmem:[#allocation5 + $0x38] sm:$0xff]
    %v62 = vld [vmem:[#allocation5 + $0x40] sm:$0xff]
    %v63 = vld [vmem:[#allocation5 + $0x48] sm:$0xff]
    %v64 = vld [vmem:[#allocation5 + $0x50] sm:$0xff]
    %v65 = vld [vmem:[#allocation5 + $0x58] sm:$0xff]
    %v66 = vld [vmem:[#allocation5 + $0x60] sm:$0xff]
    %v67 = vld [vmem:[#allocation5 + $0x68] sm:$0xff]
    %v68 = vld [vmem:[#allocation5 + $0x70] sm:$0xff]
    %v69 = vld [vmem:[#allocation5 + $0x78] sm:$0xff]
    %70 = vmatprep.subr.mxu0 0.0
    %71 = vmatpush1.xpose.msra.mxu0 %v69
    %72 = vmatprep.subr.mxu0 0.0
    %73 = vmatpush1.xpose.msra.mxu0 %v68
    %74 = vmatprep.subr.mxu0 0.0
    %75 = vmatpush1.xpose.msra.mxu0 %v67
    %76 = vmatprep.subr.mxu0 0.0
    %77 = vmatpush1.xpose.msra.mxu0 %v66
    %78 = vmatprep.subr.mxu0 0.0
    %79 = vmatpush1.xpose.msra.mxu0 %v65
    %80 = vmatprep.subr.mxu0 0.0
    %81 = vmatpush1.xpose.msra.mxu0 %v64
    %82 = vmatprep.subr.mxu0 0.0
    %83 = vmatpush1.xpose.msra.mxu0 %v63
    %84 = vmatprep.subr.mxu0 0.0
    %85 = vmatpush1.xpose.msra.mxu0 %v62
    %86 = vmatprep.subr.mxu0 0.0
    %87 = vmatpush1.xpose.msra.mxu0 %v61
    %88 = vmatprep.subr.mxu0 0.0
    %89 = vmatpush1.xpose.msra.mxu0 %v60
    %90 = vmatprep.subr.mxu0 0.0
    %91 = vmatpush1.xpose.msra.mxu0 %v59
    %92 = vmatprep.subr.mxu0 0.0
    %93 = vmatpush1.xpose.msra.mxu0 %v58
    %94 = vmatprep.subr.mxu0 0.0
    %95 = vmatpush1.xpose.msra.mxu0 %v57
    %96 = vmatprep.subr.mxu0 0.0
    %97 = vmatpush1.xpose.msra.mxu0 %v56
    %98 = vmatprep.subr.mxu0 0.0
    %99 = vmatpush1.xpose.msra.mxu0 %v55
    %100 = vmatprep.subr.mxu0 0.0
    %101 = vmatpush1.xpose.msra.mxu0 %v54
    %102 = vmatprep.subr.mxu0 0.0
    %103 = vmatpush2.xpose.msra.mxu0 0.0
    %104 = vmatprep.subr.mxu0 0.0
    %105 = vmatpush2.xpose.msra.mxu0 0.0
    %106 = vmatprep.subr.mxu0 0.0
    %107 = vmatpush2.xpose.msra.mxu0 0.0
    %108 = vmatprep.subr.mxu0 0.0
    %109 = vmatpush2.xpose.msra.mxu0 0.0
    %110 = vmatprep.subr.mxu0 0.0
    %111 = vmatpush2.xpose.msra.mxu0 0.0
    %112 = vmatprep.subr.mxu0 0.0
    %113 = vmatpush2.xpose.msra.mxu0 0.0
    %114 = vmatprep.subr.mxu0 0.0
    %115 = vmatpush2.xpose.msra.mxu0 0.0
    %116 = vmatprep.subr.mxu0 0.0
    %117 = vmatpush2.xpose.msra.mxu0 0.0
    %118 = vmatprep.subr.mxu0 0.0
    %119 = vmatpush2.xpose.msra.mxu0 0.0
    %120 = vmatprep.subr.mxu0 0.0
    %121 = vmatpush2.xpose.msra.mxu0 0.0
    %122 = vmatprep.subr.mxu0 0.0
    %123 = vmatpush2.xpose.msra.mxu0 0.0
    %124 = vmatprep.subr.mxu0 0.0
    %125 = vmatpush2.xpose.msra.mxu0 0.0
    %126 = vmatprep.subr.mxu0 0.0
    %127 = vmatpush2.xpose.msra.mxu0 0.0
    %128 = vmatprep.subr.mxu0 0.0
    %129 = vmatpush2.xpose.msra.mxu0 0.0
    %130 = vmatprep.subr.mxu0 0.0
    %131 = vmatpush2.xpose.msra.mxu0 0.0
    %132 = vmatprep.subr.mxu0 0.0
    %133 = vmatpush2.xpose.msra.mxu0 0.0
    %134 = vmatprep.mubr.f32.mxu0 0.0
    %135 = vmatmul.mubr.f32.gmra.mxu0 %v53
    %v136 = vpop.f32.mrf.mxu0
    %v137 = vadd.f32 0.0, %v136
    %v138 = vpop.f32.mrf.mxu0
    %139 = vdwg.mxu0
    %vm140 = vcmp.gt.f32.partialorder %v52, 0.0
    %vm141 = vcmp.eq.f32.partialorder %v52, 0.0
    %v142 = vmax.f32 %v52, 0.0
    %v143 = vand.u32 2147483647, %v137
    %v144 = vsub.f32 0.0, %v143
    %v145 = vmul.f32 %v144, 1.442695
    %v146 = vpow.pop %v145
    %v147 = vadd.f32 %v146, 1.0
    %v148 = vsel %vm140, %v142, %v147
    %v149 = vlog2.pop %v148
    %v150 = vmul.f32 %v149, 0.6931472
    %v151 = vsub.f32 %v137, %v150
    %v152 = vrsqrt.pop %v142
    %v153 = vmul.f32 %v142, %v152
    %vm154 = vcmp.eq.f32.partialorder %v142, inf
    %v155 = vsel %vm154, %v142, %v153
    %vm156 = vcmp.eq.f32.partialorder %v142, 0.0
    %v157 = vand.u32 %v142, 2147483648
    %v158 = vsel %vm156, %v157, %v155
    %v159 = vmul.f32 %v158, 0.125
    %v160 = vadd.f32 %v159, 0.05
    %v161 = vmul.f32 %v151, %v151
    %v162 = vmul.f32 %v160, %v161
    %v163 = vmax.f32 %v137, 0.0
    %v164 = vadd.f32 %v163, %v150
    %v165 = vsel %vm141, %v164, 0.0
    %v166 = vsel %vm140, %v162, %v165
    %167 = vadd.xlane.f32.xlu0 %v166
    %v168 = vpop.xlane.xlu0 %167
    %v169 = vrot.slane %v168, 4
    %v170 = vadd.f32 %v168, %v169
    %v171 = vrot.slane %v170, 2
    %v172 = vadd.f32 %v170, %v171
    %v173 = vrot.slane %v172, 1
    %v174 = vadd.f32 %v172, %v173
    %s175 = vtos %v174
    %v176 = vstv %s175
    %177 = vst [vmem:[#allocation8] sm:$0xff] %v176
    // Predicated region
    $region26: #{tpu_custom_call.1} parent=1 // pred_check
      _
    $region27: #{tpu_custom_call.1} parent=1 // pred_check_branch
      %179 = sbr.rel (0) target = $region29
    $region28: #{tpu_custom_call.1} parent=1 // pred_region
      %s181 = ssub.s32 128, 128
      %182 = vsyncadd [#allocation4], %s181
      %s184 = sshll.u32 [#allocation8], 4
      %s185 = int_to_ptr.vmem [resolvable:$true] %s184
      %187 = dma.vmem_to_hbm [thread:$0]  %s185, 128, %s3, [#allocation4]
    $region29: #{tpu_custom_call.1} parent=1 // pred_fallthru
      _
    // Predicated region
    $region30: #{tpu_custom_call.1} parent=1 // pred_check
      _
    $region31: #{tpu_custom_call.1} parent=1 // pred_check_branch
      %189 = sbr.rel (0) target = $region33
    $region32: #{tpu_custom_call.1} parent=1 // pred_region
      %190 = dma.done [#allocation4], 128
    $region33: #{tpu_custom_call.1} parent=1 // pred_fallthru
      _
    %191 = vsyncpa [#allocation3], 1
    %192 = vsyncpa [#allocation6], 1
    %193 = vsyncpa [#allocation4], 1

</llo_original>
